<compile_context>
chip_gen: v5e
topology: v5e:2x2
jax: 0.10.0
libtpu: 0.0.40
codegen_flags: <defaults>
</compile_context>

<pallas_src>
import numpy as np
import jax
import jax.numpy as jnp
from jax.experimental import pallas as pl
from jax.experimental.pallas import tpu as pltpu


# ----------------------------- Pallas hot path ------------------------------

def _linear_kernel(x_ref, w_ref, b_ref, o_ref, acc_ref):
    # x: (tm, tk), w: (tk, tn)  [weight pre-transposed to [K, N]], b: (1, tn) f32.
    k = pl.program_id(2)

    @pl.when(k == 0)
    def _():
        acc_ref[...] = jnp.zeros_like(acc_ref)

    acc_ref[...] += jnp.dot(x_ref[...], w_ref[...],
                            preferred_element_type=jnp.float32)

    @pl.when(k == pl.num_programs(2) - 1)
    def _():
        # f32 bias added to the f32 accumulator, single cast to the output dtype.
        o_ref[...] = (acc_ref[...] + b_ref[...]).astype(o_ref.dtype)


def _round_up(x, m):
    return (x + m - 1) // m * m


def _pick_tile(dim, target, mult):
    """Largest multiple of `mult` that divides `dim` and is <= target, else `dim`."""
    best = 0
    c = mult
    while c <= min(dim, target):
        if dim % c == 0:
            best = c
        c += mult
    return best if best else dim


def _vmem_capacity_bytes():
    try:
        return int(pltpu.get_tpu_info().vmem_capacity_bytes)
    except Exception:
        return 64 * 2**20          # conservative fallback (v7x per-TensorCore VMEM)


def _footprint_bytes(tm, tn, tk, in_bytes, out_bytes):
    # double-buffered x / w / out tiles + f32 accumulator scratch + f32 bias row
    return (2 * tm * tk * in_bytes + 2 * tk * tn * in_bytes
            + 2 * tm * tn * out_bytes + tm * tn * 4 + 2 * tn * 4)


def pallas_linear(x2d, w_t, b_row, *, out_dtype=None):
    """y = x2d @ w_t + b_row, with w_t the nn.Linear weight pre-transposed to [K, N]."""
    M, K = x2d.shape
    Kw, N = w_t.shape
    assert Kw == K, (x2d.shape, w_t.shape)
    assert x2d.dtype == w_t.dtype, (x2d.dtype, w_t.dtype)

    cdt = x2d.dtype
    out_dtype = out_dtype or cdt
    in_bytes = jnp.dtype(cdt).itemsize
    out_bytes = jnp.dtype(out_dtype).itemsize
    sublane = 16 if in_bytes == 2 else 8

    budget = int(0.75 * _vmem_capacity_bytes())     # ~96 MiB v5e/v6e, ~48 MiB v7x

    # --- tile selection: as large as the per-generation VMEM budget allows -----
    tm = min(1024 if in_bytes == 2 else 512, _round_up(M, sublane))
    tn = _pick_tile(N, 1024, 256)                   # 256-lane multiples fill v6e/v7x MXU
    if tn % 256 != 0:
        tn = _pick_tile(N, 1024, 128)               # 128-lane fallback (v5e / ragged N)
    tk = _pick_tile(K, 1024, 128)

    while _footprint_bytes(tm, tn, tk, in_bytes, out_bytes) > budget and tm > 2 * sublane:
        tm = max(sublane, _round_up(tm // 2, sublane))

    # v7x has 2 TensorCores: make sure the "parallel" (i, j) grid has >= 2 blocks.
    if pl.cdiv(M, tm) * (N // tn) == 1:
        if tn >= 512 and tn % 512 == 0:
            tn //= 2
        elif tm >= 2 * sublane and M > _round_up(tm // 2, sublane):
            tm = _round_up(tm // 2, sublane)

    grid = (pl.cdiv(M, tm), N // tn, K // tk)       # ragged M -> partial trailing block

    footprint = _footprint_bytes(tm, tn, tk, in_bytes, out_bytes)
    vmem_limit = int(min(budget, max(32 * 2**20, 2 * footprint)))

    cost = pl.CostEstimate(
        flops=2 * M * N * K,
        transcendentals=0,
        bytes_accessed=(M * K + K * N) * in_bytes + M * N * out_bytes + N * 4,
    )

    return pl.pallas_call(
        _linear_kernel,
        out_shape=jax.ShapeDtypeStruct((M, N), out_dtype),
        grid_spec=pltpu.PrefetchScalarGridSpec(
            num_scalar_prefetch=0,
            grid=grid,
            in_specs=[
                pl.BlockSpec((tm, tk), lambda i, j, k: (i, k)),   # x tile
                pl.BlockSpec((tk, tn), lambda i, j, k: (k, j)),   # weight [K,N] tile
                pl.BlockSpec((1, tn), lambda i, j, k: (0, j)),    # f32 bias row
            ],
            out_specs=pl.BlockSpec((tm, tn), lambda i, j, k: (i, j)),
            scratch_shapes=[pltpu.VMEM((tm, tn), jnp.float32)],
        ),
        compiler_params=pltpu.CompilerParams(
            dimension_semantics=("parallel", "parallel", "arbitrary"),
            vmem_limit_bytes=vmem_limit,
        ),
        cost_estimate=cost,
        # TODO(synk): sweep pipeline_mode=pl.Buffered(3) on x/w if DMAs stay exposed.
    )(x2d, w_t, b_row)


# ------------------------ one-time parameter preparation --------------------

def _qkv_perm(n_out, world_size):
    """Column permutation equivalent to the torch qkv re-interleave:
    [q0..q_{W-1} k0..k_{W-1} v0..v_{W-1}] -> [q0 k0 v0  q1 k1 v1 ...]."""
    assert n_out % (world_size * 3) == 0, (n_out, world_size)
    chunk = n_out // (world_size * 3)
    idx = []
    for i in range(world_size):
        for j in range(3):
            start = (i + j * world_size) * chunk
            idx.append(np.arange(start, start + chunk))
    return np.concatenate(idx)


def prepare_linear_params(weight, bias, *, world_size=1, qkv=False, compute_dtype=None):
    """One-time prep: fold the qkv output re-interleave into the weight rows / bias
    entries, transpose the weight to [K, N], cast to the compute dtype, f32 bias."""
    w = jnp.asarray(weight)
    b = jnp.asarray(bias)
    if qkv:
        perm = _qkv_perm(w.shape[0], world_size)
        w = w[perm]
        b = b[perm]
    cdt = compute_dtype or w.dtype
    w_t = jnp.transpose(w).astype(cdt)               # [K, N]
    b_row = b.astype(jnp.float32).reshape(1, -1)     # (1, N) f32
    return w_t, b_row


# -------------------- all_to_all emulation (glue, no compute) ---------------

def emulated_all_to_all(x, scatter_dim, gather_dim):
    """torch.distributed all_to_all over the leading rank axis of x, expressed as a
    single reshape + axis moves (one copy instead of W^2 slice/concat ops).

    x: [W, ...] with x[r] the tensor local to rank r; scatter_dim / gather_dim are
    dims of the per-rank tensor (same convention as the PyTorch code).
    """
    W = x.shape[0]
    nd = x.ndim - 1
    sd = scatter_dim % nd + 1
    gd = gather_dim % nd + 1
    shp = list(x.shape)
    x = x.reshape(shp[:sd] + [W, shp[sd] // W] + shp[sd + 1:])   # split scatter axis
    x = jnp.moveaxis(x, sd, 0)        # [dst, src, ...]; gather axis now at gd + 1
    x = jnp.moveaxis(x, 1, gd)        # src just before the gather axis (src-major cat)
    ns = list(x.shape)
    return x.reshape(ns[:gd] + [ns[gd] * ns[gd + 1]] + ns[gd + 2:])


def emulated_all_to_all_ref(x, scatter_dim, gather_dim):
    """Slow, torch-faithful split/concat emulation (reference cross-check only)."""
    W = x.shape[0]
    nd = x.ndim - 1
    sd = scatter_dim % nd + 1
    gd = gather_dim % nd + 1
    chunks = jnp.split(x, W, axis=sd)               # chunks[r][s] = piece sent s -> r
    outs = [jnp.concatenate([chunks[r][s] for s in range(W)], axis=gd - 1)
            for r in range(W)]
    return jnp.stack(outs, axis=0)


def qkv_reorder(y, world_size):
    """Reference (torch-faithful) output-side qkv re-interleave."""
    parts = jnp.split(y, world_size * 3, axis=-1)
    return jnp.concatenate(
        [jnp.concatenate([parts[i + j * world_size] for j in range(3)], axis=-1)
         for i in range(world_size)],
        axis=-1)


# ----------------------------- LinearWarpper --------------------------------

def make_linear_warpper(weight, bias, *, world_size, pre=False, qkv=False,
                        compute_dtype=None):
    """Build the LinearWarpper forward with parameters prepared once (hoisted)."""
    w_t, b_row = prepare_linear_params(
        weight, bias, world_size=world_size, qkv=(qkv and not pre),
        compute_dtype=compute_dtype)

    def forward(x):
        if pre:
            x = emulated_all_to_all(x, scatter_dim=1, gather_dim=-1)
        W_, B, S, Din = x.shape
        x2d = x.reshape(-1, Din)
        if x2d.dtype != w_t.dtype:
            x2d = x2d.astype(w_t.dtype)          # bf16 compute path for f32 activations
        y = pallas_linear(x2d, w_t, b_row, out_dtype=x.dtype).reshape(W_, B, S, -1)
        if not pre:
            # TODO(synk): when N // world_size is tile-aligned, fold this output
            # all_to_all into the out BlockSpec index_map (free DMA addressing).
            y = emulated_all_to_all(y, scatter_dim=-1, gather_dim=1)
        return y

    return forward


def linear_warpper_reference(x, weight, bias, *, world_size, pre=False, qkv=False):
    """Pure-JAX reference, faithful to the PyTorch module's op order (uses the slow
    split/concat all_to_all so it also cross-checks the fast emulation)."""
    if pre:
        x = emulated_all_to_all_ref(x, scatter_dim=1, gather_dim=-1)
    y = x @ weight.T + bias
    if not pre:
        if qkv:
            y = qkv_reorder(y, world_size)
        y = emulated_all_to_all_ref(y, scatter_dim=-1, gather_dim=1)
    return y


if __name__ == "__main__":
    key = jax.random.PRNGKey(0)
    k1, k2, k3, k4, k5, k6 = jax.random.split(key, 6)

    W_RANKS = 2          # emulated world_size
    B, S_LOCAL, D = 2, 8, 32
    bound = 1.0 / float(np.sqrt(D))

    # ---- case 1: pre=False, qkv=True  (fused qkv projection, D -> 3*D) ----
    x1 = jax.random.normal(k1, (W_RANKS, B, S_LOCAL, D), dtype=jnp.float32)
    w_qkv = jax.random.uniform(k2, (3 * D, D), minval=-bound, maxval=bound,
                               dtype=jnp.float32)
    b_qkv = jax.random.uniform(k3, (3 * D,), minval=-bound, maxval=bound,
                               dtype=jnp.float32)
    fwd1 = make_linear_warpper(w_qkv, b_qkv, world_size=W_RANKS, pre=False, qkv=True)
    out1 = fwd1(x1)
    ref1 = linear_warpper_reference(x1, w_qkv, b_qkv, world_size=W_RANKS,
                                    pre=False, qkv=True)

    # ---- case 2: pre=True (output projection path, gather hidden first) ----
    x2 = jax.random.normal(k4, (W_RANKS, B, 2 * S_LOCAL, D // W_RANKS),
                           dtype=jnp.float32)
    w_o = jax.random.uniform(k5, (D, D), minval=-bound, maxval=bound,
                             dtype=jnp.float32)
    b_o = jax.random.uniform(k6, (D,), minval=-bound, maxval=bound,
                             dtype=jnp.float32)
    fwd2 = make_linear_warpper(w_o, b_o, world_size=W_RANKS, pre=True, qkv=False)
    out2 = fwd2(x2)
    ref2 = linear_warpper_reference(x2, w_o, b_o, world_size=W_RANKS,
                                    pre=True, qkv=False)

    # ---- case 3: ragged M exercising the partial trailing M block (no padding) ----
    x3 = jax.random.normal(k1, (300, 384), dtype=jnp.float32)
    w3 = jax.random.normal(k2, (384, 384), dtype=jnp.float32) * 0.05
    b3 = jax.random.normal(k3, (384,), dtype=jnp.float32)
    w3_t, b3_row = prepare_linear_params(w3, b3)
    out3 = pallas_linear(x3, w3_t, b3_row)
    ref3 = x3 @ w3.T + b3

    # ---- case 4: bf16 compute path for f32 data (f32 accumulator + f32 output) ----
    w3_bt, b3_brow = prepare_linear_params(w3, b3, compute_dtype=jnp.bfloat16)
    out4 = pallas_linear(x3.astype(jnp.bfloat16), w3_bt, b3_brow,
                         out_dtype=jnp.float32)

    jax.block_until_ready((out1, out2, out3, out4))
    assert out1.shape == (W_RANKS, B, W_RANKS * S_LOCAL, 3 * D // W_RANKS), out1.shape
    assert out2.shape == (W_RANKS, B, S_LOCAL, D), out2.shape
    assert out3.shape == (300, 384), out3.shape
    assert jnp.allclose(out1, ref1, atol=1e-5, rtol=1e-5)
    assert jnp.allclose(out2, ref2, atol=1e-5, rtol=1e-5)
    assert jnp.allclose(out3, ref3, atol=1e-3, rtol=1e-3)
    assert jnp.allclose(out4, ref3, atol=1e-1, rtol=1e-1)   # bf16-compute tolerance
    print("KERNEL_OK")
</pallas_src>

<mosaic_0001>
module attributes {stable_mosaic.version = 11 : i64} {
  func.func @_linear_kernel(%arg0: i32, %arg1: i32, %arg2: i32, %arg3: memref<16x32xf32, #tpu.memory_space<vmem>>, %arg4: memref<32x96xf32, #tpu.memory_space<vmem>>, %arg5: memref<1x96xf32, #tpu.memory_space<vmem>>, %arg6: memref<16x96xf32, #tpu.memory_space<vmem>>, %arg7: memref<16x96xf32, #tpu.memory_space<vmem>>) attributes {dimension_semantics = [#tpu.dimension_semantics<parallel>, #tpu.dimension_semantics<parallel>, #tpu.dimension_semantics<arbitrary>], iteration_bounds = array<i64: 2, 1, 1>, scalar_prefetch = 0 : i64, scratch_operands = 1 : i64, tpu.core_type = #tpu.core_type<tc>, window_params = [{transform_indices = @transform_0, window_bounds = array<i64: 16, 32>}, {transform_indices = @transform_1, window_bounds = array<i64: 32, 96>}, {transform_indices = @transform_2, window_bounds = array<i64: 1, 96>}, {transform_indices = @transform_3, window_bounds = array<i64: 16, 96>}]} {
    %c0_i32 = arith.constant 0 : i32
    %0 = arith.cmpi eq, %arg2, %c0_i32 : i32
    %1 = arith.extui %0 : i1 to i32
    %c0_i32_0 = arith.constant 0 : i32
    %2 = arith.cmpi ne, %1, %c0_i32_0 : i32
    scf.if %2 {
      %cst_10 = arith.constant 0.000000e+00 : f32
      %12 = vector.broadcast %cst_10 : f32 to vector<16x96xf32>
      %c0_11 = arith.constant 0 : index
      %c0_12 = arith.constant 0 : index
      %13 = vector.load %arg7[%c0_11, %c0_12] : memref<16x96xf32, #tpu.memory_space<vmem>>, vector<16x96xf32>
      tpu.vector_store %arg7[%c0_11, %c0_12], %12 {strides = array<i32>} : memref<16x96xf32, #tpu.memory_space<vmem>>, vector<16x96xf32>,
    } else {
    }
    %c0 = arith.constant 0 : index
    %c0_1 = arith.constant 0 : index
    %3 = vector.load %arg7[%c0, %c0_1] : memref<16x96xf32, #tpu.memory_space<vmem>>, vector<16x96xf32>
    %c0_2 = arith.constant 0 : index
    %c0_3 = arith.constant 0 : index
    %4 = vector.load %arg3[%c0_2, %c0_3] : memref<16x32xf32, #tpu.memory_space<vmem>>, vector<16x32xf32>
    %c0_4 = arith.constant 0 : index
    %c0_5 = arith.constant 0 : index
    %5 = vector.load %arg4[%c0_4, %c0_5] : memref<32x96xf32, #tpu.memory_space<vmem>>, vector<32x96xf32>
    %cst = arith.constant dense<0.000000e+00> : vector<16x96xf32>
    %6 = tpu.matmul %4, %5, %cst {dimension_numbers = #tpu.dot_dimension_numbers<[1], [0], [0], [1], [0, 0, 1, 1], [], []>} : vector<16x32xf32>, vector<32x96xf32>, vector<16x96xf32> -> vector<16x96xf32>
    %7 = arith.addf %3, %6 : vector<16x96xf32>
    %c0_6 = arith.constant 0 : index
    %c0_7 = arith.constant 0 : index
    %8 = vector.load %arg7[%c0_6, %c0_7] : memref<16x96xf32, #tpu.memory_space<vmem>>, vector<16x96xf32>
    tpu.vector_store %arg7[%c0_6, %c0_7], %7 {strides = array<i32>} : memref<16x96xf32, #tpu.memory_space<vmem>>, vector<16x96xf32>,
    %c0_i32_8 = arith.constant 0 : i32
    %9 = arith.cmpi eq, %arg2, %c0_i32_8 : i32
    %10 = arith.extui %9 : i1 to i32
    %c0_i32_9 = arith.constant 0 : i32
    %11 = arith.cmpi ne, %10, %c0_i32_9 : i32
    scf.if %11 {
      %c0_10 = arith.constant 0 : index
      %c0_11 = arith.constant 0 : index
      %12 = vector.load %arg7[%c0_10, %c0_11] : memref<16x96xf32, #tpu.memory_space<vmem>>, vector<16x96xf32>
      %c0_12 = arith.constant 0 : index
      %c0_13 = arith.constant 0 : index
      %13 = vector.load %arg5[%c0_12, %c0_13] : memref<1x96xf32, #tpu.memory_space<vmem>>, vector<1x96xf32>
      %14 = vector.broadcast %13 : vector<1x96xf32> to vector<16x96xf32>
      %15 = arith.addf %12, %14 : vector<16x96xf32>
      %c0_14 = arith.constant 0 : index
      %c0_15 = arith.constant 0 : index
      %16 = vector.load %arg6[%c0_14, %c0_15] : memref<16x96xf32, #tpu.memory_space<vmem>>, vector<16x96xf32>
      tpu.vector_store %arg6[%c0_14, %c0_15], %15 {strides = array<i32>} : memref<16x96xf32, #tpu.memory_space<vmem>>, vector<16x96xf32>,
    } else {
    }
    return
  }
  func.func @transform_0(%arg0: i32, %arg1: i32, %arg2: i32) -> (i32, i32) {
    %c0_i32 = arith.constant 0 : i32
    return %arg0, %arg2 : i32, i32
  }
  func.func @transform_1(%arg0: i32, %arg1: i32, %arg2: i32) -> (i32, i32) {
    %c0_i32 = arith.constant 0 : i32
    return %arg2, %arg1 : i32, i32
  }
  func.func @transform_2(%arg0: i32, %arg1: i32, %arg2: i32) -> (i32, i32) {
    %c0_i32 = arith.constant 0 : i32
    %c0_i32_0 = arith.constant 0 : i32
    return %c0_i32, %arg1 : i32, i32
  }
  func.func @transform_3(%arg0: i32, %arg1: i32, %arg2: i32) -> (i32, i32) {
    %c0_i32 = arith.constant 0 : i32
    return %arg0, %arg1 : i32, i32
  }
}

</mosaic_0001>

<llo_original>
// kernel: tpu_custom_call.1
$region0: #{tpu_custom_call.1}
  #allocation0 [shape = 'u32[]', space=smem, size = 0x4, offset = 0x4, fixed_abs, tag = 'smem constant byte address 0x4 - core index']
  #allocation1 [shape = 'u32[72,128]{1,0:T(1,128)}', space=vmem, size = 0x9000, scoped, tag = 'internal scratch']
  #allocation2 [shape = 'f32[16,96]{1,0:T(8,128)}', space=vmem, size = 0x2000, scoped, tag = 'scratch operand']
  %s0 = inlined_call_operand.hbm [shape: f32[32,32], index: 0, kind: input, shape index: {}]
  %s1 = inlined_call_operand.hbm [shape: f32[32,96], index: 1, kind: input, shape index: {}]
  %s2 = inlined_call_operand.vmem [shape: f32[1,96], index: 2, kind: input, shape index: {}]
  %s3 = inlined_call_operand.hbm [shape: f32[32,96], index: 3, kind: output, shape index: {}]
  %s4 = sld [smem:[#allocation0]]
  $region61: #{tpu_custom_call.1} parent=0
    _
  %s6 = ssub.s32 1, %s4
  %s7 = scalar_select 0, %s6, %s4
  $region1: #{tpu_custom_call.1} parent=0
    #allocation3 [shape = 'u8[16384]{0}', space=vmem, size = 0x4000, scoped, tag = 'input window, operand 0']
    #allocation4 [shape = 's32[2]{0}', space=sflag, size = 0x8, scoped, tag = 'scoped memory for tpu_custom_call.1']
    #allocation5 [shape = 's32[2]{0}', space=sflag, size = 0x8, scoped, tag = 'scoped memory for tpu_custom_call.1']
    #allocation6 [shape = 'u8[16384]{0}', space=vmem, size = 0x4000, scoped, tag = 'input window, operand 1, single buffered']
    #allocation7 [shape = 's32[1]{0}', space=sflag, size = 0x4, scoped, tag = 'scoped memory for tpu_custom_call.1']
    #allocation8 [shape = 'u8[16384]{0}', space=vmem, size = 0x4000, scoped, tag = 'output window, operand 0']
    %8 = vsyncpa [#allocation4], 0
    %s9 = scalar_lea.sflag [#allocation4], 1
    %10 = vsyncpa %s9, 0
    %11 = vsyncpa [#allocation7], 0
    %12 = vsyncpa [#allocation5], 0
    %s13 = scalar_lea.sflag [#allocation5], 1
    %14 = vsyncpa %s13, 0
    loop: start=0, step=1, limit=4
    $region2: #{tpu_custom_call.1} parent=1 // loop_pre_header
      _
    $region3: #{tpu_custom_call.1} parent=1 // loop_header
      %s16 = sphi 0, %s20
      %p17 = scmp.ge.s32.totalorder %s16, 4
      %s23 = sphi 0, %s42
      %s24 = sphi 0, %s38
      %s25 = sphi 0, %s34
      %s26 = sphi 0, %s23
      %s27 = sphi 0, %s24
      %s28 = sphi 0, %s25
      %s29 = sphi 0, %s26
      %s30 = sphi 0, %s27
      %s31 = sphi 0, %s28
      %s47 = sphi 0, %s49
      %s50 = sphi 0, %s47
      %s51 = sphi 0, %s50
      %s67 = sphi 0, %s51
      %s75 = sphi 0, %s77
      %s78 = sphi 0, %s75
      %s79 = sphi 0, %s78
      %s95 = sphi 0, %s79
      %s101 = sphi 0, %s103
      %s104 = sphi 0, %s101
      %s105 = sphi 0, %s104
      %s121 = sphi 0, %s105
      %s129 = sphi 0, %s131
      %s132 = sphi 0, %s129
      %s133 = sphi 0, %s132
      %s149 = sphi 0, %s133
    $region4: #{tpu_custom_call.1} parent=1 // loop_header_branch
      %19 = sbr.rel (%p17) target = $region8
    $region5: #{tpu_custom_call.1} parent=1 // loop_body
      %s21 = ssub.s32 %s16, 1
      %s22 = ssub.s32 %s16, 2
      %s32 = sadd.s32 1, %s25
      %p33 = scmp.ge.s32.totalorder %s32, 1
      %s34 = scalar_select %p33, 0, %s32
      %s35 = sadd.s32 1, %s24
      %s36 = scalar_select %p33, %s35, %s24
      %p37 = scmp.ge.s32.totalorder %s36, 1
      %s38 = scalar_select %p37, 0, %s36
      %s39 = sadd.s32 1, %s23
      %s40 = scalar_select %p37, %s39, %s23
      %p41 = scmp.ge.s32.totalorder %s40, 2
      %s42 = scalar_select %p41, 0, %s40
      %s43 = ssub.s32 %s23, %s42
      %s44 = ssub.s32 %s25, %s34
      %s45 = sor.u32 %s43, %s44
      %p46 = scmp.eq.s32.totalorder %s45, 0
      %s48 = sadd.s32 %s47, 1
      %s49 = scalar_select %p46, %s47, %s48
      %p52 = pneg %p46
      %p53 = scmp.eq.s32.totalorder %s16, 1
      %p54 = por %p52, %p53
      %p55 = scmp.ne.s32.totalorder %s47, %s50
      %p56 = scmp.eq.s32.totalorder %s16, 0
      %p57 = por %p55, %p56
      %p58 = scmp.ne.s32.totalorder %s47, %s50
      %p59 = scmp.eq.s32.totalorder %s21, 1
      %p60 = por %p58, %p59
      %p61 = scmp.ne.s32.totalorder %s50, %s51
      %p62 = scmp.eq.s32.totalorder %s21, 0
      %p63 = por %p61, %p62
      %p64 = scmp.ne.s32.totalorder %s50, %s51
      %p65 = scmp.eq.s32.totalorder %s22, 1
      %p66 = por %p64, %p65
      %p68 = scmp.ne.s32.totalorder %s51, %s67
      %p69 = scmp.eq.s32.totalorder %s22, 0
      %p70 = por %p68, %p69
      %s71 = ssub.s32 %s25, %s34
      %s72 = ssub.s32 %s24, %s38
      %s73 = sor.u32 %s71, %s72
      %p74 = scmp.eq.s32.totalorder %s73, 0
      %s76 = sadd.s32 %s75, 1
      %s77 = scalar_select %p74, %s75, %s76
      %p80 = pneg %p74
      %p81 = scmp.eq.s32.totalorder %s16, 1
      %p82 = por %p80, %p81
      %p83 = scmp.ne.s32.totalorder %s75, %s78
      %p84 = scmp.eq.s32.totalorder %s16, 0
      %p85 = por %p83, %p84
      %p86 = scmp.ne.s32.totalorder %s75, %s78
      %p87 = scmp.eq.s32.totalorder %s21, 1
      %p88 = por %p86, %p87
      %p89 = scmp.ne.s32.totalorder %s78, %s79
      %p90 = scmp.eq.s32.totalorder %s21, 0
      %p91 = por %p89, %p90
      %p92 = scmp.ne.s32.totalorder %s78, %s79
      %p93 = scmp.eq.s32.totalorder %s22, 1
      %p94 = por %p92, %p93
      %p96 = scmp.ne.s32.totalorder %s79, %s95
      %p97 = scmp.eq.s32.totalorder %s22, 0
      %p98 = por %p96, %p97
      %s99 = ssub.s32 %s24, %s38
      %p100 = scmp.eq.s32.totalorder %s99, 0
      %s102 = sadd.s32 %s101, 1
      %s103 = scalar_select %p100, %s101, %s102
      %p106 = pneg %p100
      %p107 = scmp.eq.s32.totalorder %s16, 1
      %p108 = por %p106, %p107
      %p109 = scmp.ne.s32.totalorder %s101, %s104
      %p110 = scmp.eq.s32.totalorder %s16, 0
      %p111 = por %p109, %p110
      %p112 = scmp.ne.s32.totalorder %s101, %s104
      %p113 = scmp.eq.s32.totalorder %s21, 1
      %p114 = por %p112, %p113
      %p115 = scmp.ne.s32.totalorder %s104, %s105
      %p116 = scmp.eq.s32.totalorder %s21, 0
      %p117 = por %p115, %p116
      %p118 = scmp.ne.s32.totalorder %s104, %s105
      %p119 = scmp.eq.s32.totalorder %s22, 1
      %p120 = por %p118, %p119
      %p122 = scmp.ne.s32.totalorder %s105, %s121
      %p123 = scmp.eq.s32.totalorder %s22, 0
      %p124 = por %p122, %p123
      %s125 = ssub.s32 %s23, %s42
      %s126 = ssub.s32 %s24, %s38
      %s127 = sor.u32 %s125, %s126
      %p128 = scmp.eq.s32.totalorder %s127, 0
      %s130 = sadd.s32 %s129, 1
      %s131 = scalar_select %p128, %s129, %s130
      %p134 = pneg %p128
      %p135 = scmp.eq.s32.totalorder %s16, 1
      %p136 = por %p134, %p135
      %p137 = scmp.ne.s32.totalorder %s129, %s132
      %p138 = scmp.eq.s32.totalorder %s16, 0
      %p139 = por %p137, %p138
      %p140 = scmp.ne.s32.totalorder %s129, %s132
      %p141 = scmp.eq.s32.totalorder %s21, 1
      %p142 = por %p140, %p141
      %p143 = scmp.ne.s32.totalorder %s132, %s133
      %p144 = scmp.eq.s32.totalorder %s21, 0
      %p145 = por %p143, %p144
      %p146 = scmp.ne.s32.totalorder %s132, %s133
      %p147 = scmp.eq.s32.totalorder %s22, 1
      %p148 = por %p146, %p147
      %p150 = scmp.ne.s32.totalorder %s133, %s149
      %p151 = scmp.eq.s32.totalorder %s22, 0
      %p152 = por %p150, %p151
      %p153 = scmp.le.s32.totalorder 1, %s16
      %p154 = scmp.lt.s32.totalorder %s16, 3
      %p155 = pnand %p153, %p154
      %p156 = pneg %p155
      // Predicated region
      $region9: #{tpu_custom_call.1} parent=5 // pred_check
        _
      $region10: #{tpu_custom_call.1} parent=5 // pred_check_branch
        %158 = sbr.rel (%p155) target = $region12
      $region11: #{tpu_custom_call.1} parent=5 // pred_region
        %s159 = ssub.s32 %s16, 1
        // Predicated region
        $region13: #{tpu_custom_call.1} parent=11 // pred_check
          %p160 = pneg %p91
        $region14: #{tpu_custom_call.1} parent=11 // pred_check_branch
          %162 = sbr.rel (%p160) target = $region16
        $region15: #{tpu_custom_call.1} parent=11 // pred_region
          %s163 = smul.u32 4, %s28
          %165 = vsyncadd [#allocation7], 0
          %s166 = sadd.s32 %s27, %s163
          %s167 = smul.addr %s166, 8
          %s168 = scalar_lea.hbm %s1, %s167
          %s169 = sshll.u32 %s168, 4
          %s170 = int_to_ptr.hbm [resolvable:$true] %s169
          %s171 = sshll.u32 [#allocation6], 4
          %s172 = int_to_ptr.vmem [resolvable:$true] %s171
          %177 = dma.hbm_to_vmem [thread:$0]  %s170, 512, %s172, [#allocation7], 128, 128, 8
        $region16: #{tpu_custom_call.1} parent=11 // pred_fallthru
          _
        // Predicated region
        $region17: #{tpu_custom_call.1} parent=11 // pred_check
          %p178 = pneg %p117
        $region18: #{tpu_custom_call.1} parent=11 // pred_check_branch
          %180 = sbr.rel (%p178) target = $region20
        $region19: #{tpu_custom_call.1} parent=11 // pred_region
          %p181 = scmp.lt.s32.totalorder %s27, 0
          %s182 = scalar_select %p181, %s27, 0
          %s183 = scalar_lea.vmem %s2, %s182
        $region20: #{tpu_custom_call.1} parent=11 // pred_fallthru
          _
      $region12: #{tpu_custom_call.1} parent=5 // pred_fallthru
        _
      %p184 = scmp.lt.s32.totalorder %s16, 2
      // Predicated region
      $region21: #{tpu_custom_call.1} parent=5 // pred_check
        %p185 = pneg %p184
      $region22: #{tpu_custom_call.1} parent=5 // pred_check_branch
        %187 = sbr.rel (%p185) target = $region24
      $region23: #{tpu_custom_call.1} parent=5 // pred_region
        // Predicated region
        $region25: #{tpu_custom_call.1} parent=23 // pred_check
          %p188 = pneg %p57
        $region26: #{tpu_custom_call.1} parent=23 // pred_check_branch
          %190 = sbr.rel (%p188) target = $region28
        $region27: #{tpu_custom_call.1} parent=23 // pred_region
          %s191 = sand.u32 %s47, 1
          %s192 = scalar_lea.sflag [#allocation4], %s191
          %s193 = sand.u32 %s47, 1
          %s194 = smul.addr %s193, 16
          %s195 = scalar_lea.vmem [#allocation3], %s194
          %s196 = smul.u32 2, %s23
          %198 = vsyncadd %s192, 0
          %s199 = sadd.s32 %s25, %s196
          %s200 = smul.addr %s199, 8
          %s201 = scalar_lea.hbm %s0, %s200
          %s202 = sshll.u32 %s201, 4
          %s203 = int_to_ptr.hbm [resolvable:$true] %s202
          %s204 = sshll.u32 %s195, 4
          %s205 = int_to_ptr.vmem [resolvable:$true] %s204
          %210 = dma.hbm_to_vmem [thread:$0]  %s203, 256, %s205, %s192, 128, 128, 8
        $region28: #{tpu_custom_call.1} parent=23 // pred_fallthru
          _
      $region24: #{tpu_custom_call.1} parent=5 // pred_fallthru
        _
      %p211 = scmp.le.s32.totalorder 1, %s16
      %p212 = scmp.lt.s32.totalorder %s16, 3
      %p213 = pnand %p211, %p212
      %p214 = pneg %p213
      // Predicated region
      $region29: #{tpu_custom_call.1} parent=5 // pred_check
        _
      $region30: #{tpu_custom_call.1} parent=5 // pred_check_branch
        %216 = sbr.rel (%p213) target = $region32
      $region31: #{tpu_custom_call.1} parent=5 // pred_region
        %s217 = ssub.s32 %s16, 1
        %s218 = sand.u32 %s50, 1
        %s219 = scalar_lea.sflag [#allocation4], %s218
        %s220 = sand.u32 %s50, 1
        %s221 = smul.addr %s220, 16
        %s222 = scalar_lea.vmem [#allocation3], %s221
        // Predicated region
        $region33: #{tpu_custom_call.1} parent=31 // pred_check
          %p223 = pneg %p63
        $region34: #{tpu_custom_call.1} parent=31 // pred_check_branch
          %225 = sbr.rel (%p223) target = $region36
        $region35: #{tpu_custom_call.1} parent=31 // pred_region
          %227 = dma.done %s219, 256
        $region36: #{tpu_custom_call.1} parent=31 // pred_fallthru
          _
        // Predicated region
        $region37: #{tpu_custom_call.1} parent=31 // pred_check
          %p228 = pneg %p91
        $region38: #{tpu_custom_call.1} parent=31 // pred_check_branch
          %230 = sbr.rel (%p228) target = $region40
        $region39: #{tpu_custom_call.1} parent=31 // pred_region
          %232 = dma.done [#allocation7], 512
        $region40: #{tpu_custom_call.1} parent=31 // pred_fallthru
          _
        %s233 = sand.u32 %s50, 1
        %s234 = scalar_lea.sflag [#allocation4], %s233
        %s235 = sand.u32 %s50, 1
        %s236 = smul.addr %s235, 16
        %s237 = scalar_lea.vmem [#allocation3], %s236
        %p238 = pneg %p63
        %p239 = pneg %p60
        %p240 = pneg %p91
        %p241 = pneg %p88
        %p242 = scmp.lt.s32.totalorder %s27, 0
        %s243 = scalar_select %p242, %s27, 0
        %s244 = scalar_lea.vmem %s2, %s243
        %p245 = pneg %p117
        %p246 = pneg %p114
        %p247 = pneg %p145
        %p248 = pneg %p142
        %s249 = sand.u32 %s132, 1
        %s250 = scalar_lea.sflag [#allocation5], %s249
        %s251 = sand.u32 %s132, 1
        %s252 = smul.addr %s251, 16
        %s253 = scalar_lea.vmem [#allocation8], %s252
        %s254 = smul.u32 2, %s26
        %s255 = smul.u32 4, %s28
        %p256 = scmp.lt.s32.totalorder %s27, 0
        %s257 = scalar_select %p256, %s27, 0
        %s258 = scalar_lea.vmem %s2, %s257
        %s259 = smul.u32 2, %s26
        %p260 = scmp.eq.s32.totalorder %s28, 0
        // Predicated region
        $region41: #{tpu_custom_call.1} parent=31 // pred_check
          %p261 = pneg %p260
        $region42: #{tpu_custom_call.1} parent=31 // pred_check_branch
          %263 = sbr.rel (%p261) target = $region44
        $region43: #{tpu_custom_call.1} parent=31 // pred_region
          %vm264 = vcmask 785408
          %265 = vst.msk [vmem:[#allocation2] sm:$0xff] %vm264, 0.0
          %266 = vst.msk [vmem:[#allocation2 + $0x8] sm:$0xff] %vm264, 0.0
        $region44: #{tpu_custom_call.1} parent=31 // pred_fallthru
          _
        %v267 = vld [vmem:[#allocation2] sm:$0xff]
        %v268 = vld [vmem:[#allocation2 + $0x8] sm:$0xff]
        %v269 = vld [vmem:[%s222] sm:$0xff]
        %v270 = vld [vmem:[%s222 + $0x8] sm:$0xff]
        %v271 = vld [vmem:[#allocation6] sm:$0xff]
        %v272 = vld [vmem:[#allocation6 + $0x8] sm:$0xff]
        %v273 = vld [vmem:[#allocation6 + $0x10] sm:$0xff]
        %v274 = vld [vmem:[#allocation6 + $0x18] sm:$0xff]
        %vm275 = vcmask 261120
        %v277 = vsel %vm275, %v269, 0
        %v280 = vsel %vm275, %v270, 0
        %282 = vmatpush.msra.mxu0 0.0
        %283 = vmatpush.msra.mxu0 0.0
        %284 = vmatpush.msra.mxu0 0.0
        %285 = vmatpush.msra.mxu0 0.0
        %286 = vmatpush.msra.mxu0 0.0
        %287 = vmatpush.msra.mxu0 0.0
        %288 = vmatpush.msra.mxu0 0.0
        %289 = vmatpush.msra.mxu0 0.0
        %290 = vmatpush.msra.mxu0 0.0
        %291 = vmatpush.msra.mxu0 0.0
        %292 = vmatpush.msra.mxu0 0.0
        %293 = vmatpush.msra.mxu0 0.0
        %294 = vmatpush.msra.mxu0 %v274
        %295 = vmatpush.msra.mxu0 %v273
        %296 = vmatpush.msra.mxu0 %v272
        %297 = vmatpush.msra.mxu0 %v271
        %298 = vmatmul.f32.gmra.mxu0 %v277
        %v299 = vpop.f32.mrf.mxu0
        %v300 = vadd.f32 0.0, %v299
        %301 = vmatmul.f32.gmra.mxu0 %v280
        %v302 = vpop.f32.mrf.mxu0
        %v303 = vadd.f32 0.0, %v302
        %304 = vdwg.mxu0
        %v305 = vadd.f32 %v267, %v300
        %v306 = vadd.f32 %v268, %v303
        %vm307 = vcmask 785408
        %308 = vst.msk [vmem:[#allocation2] sm:$0xff] %vm307, %v305
        %309 = vst.msk [vmem:[#allocation2 + $0x8] sm:$0xff] %vm307, %v306
        // Predicated region
        $region45: #{tpu_custom_call.1} parent=31 // pred_check
          %p310 = pneg %p260
        $region46: #{tpu_custom_call.1} parent=31 // pred_check_branch
          %312 = sbr.rel (%p310) target = $region48
        $region47: #{tpu_custom_call.1} parent=31 // pred_region
          %v313 = vld [vmem:[#allocation2] sm:$0xff]
          %v314 = vld [vmem:[#allocation2 + $0x8] sm:$0xff]
          %v315 = vld [vmem:[%s258] sm:$0x1]
          %v317 = vperm.slane %v315, 0
          %v319 = vadd.f32 %v313, %v317
          %v320 = vadd.f32 %v314, %v317
          %321 = vst.msk [vmem:[%s253] sm:$0xff] %vm307, %v319
          %322 = vst.msk [vmem:[%s253 + $0x8] sm:$0xff] %vm307, %v320
        $region48: #{tpu_custom_call.1} parent=31 // pred_fallthru
          _
        %s323 = sand.u32 %s132, 1
        %s324 = scalar_lea.sflag [#allocation5], %s323
        %s325 = sand.u32 %s132, 1
        %s326 = smul.addr %s325, 16
        %s327 = scalar_lea.vmem [#allocation8], %s326
        // Predicated region
        $region49: #{tpu_custom_call.1} parent=31 // pred_check
          %p328 = pneg %p142
        $region50: #{tpu_custom_call.1} parent=31 // pred_check_branch
          %330 = sbr.rel (%p328) target = $region52
        $region51: #{tpu_custom_call.1} parent=31 // pred_region
          %s331 = smul.u32 2, %s26
          %333 = vsyncadd %s324, 0
          %s334 = sadd.s32 %s27, %s331
          %s335 = smul.addr %s334, 8
          %s336 = scalar_lea.hbm %s3, %s335
          %s337 = sshll.u32 %s327, 4
          %s338 = int_to_ptr.vmem [resolvable:$true] %s337
          %s339 = sshll.u32 %s336, 4
          %s340 = int_to_ptr.hbm [resolvable:$true] %s339
          %345 = dma.vmem_to_hbm [thread:$0]  %s338, 256, %s340, %s324, 128, 128, 8
        $region52: #{tpu_custom_call.1} parent=31 // pred_fallthru
          _
      $region32: #{tpu_custom_call.1} parent=5 // pred_fallthru
        _
      %p346 = scmp.le.s32.totalorder 2, %s16
      // Predicated region
      $region53: #{tpu_custom_call.1} parent=5 // pred_check
        %p347 = pneg %p346
      $region54: #{tpu_custom_call.1} parent=5 // pred_check_branch
        %349 = sbr.rel (%p347) target = $region56
      $region55: #{tpu_custom_call.1} parent=5 // pred_region
        %s350 = ssub.s32 %s16, 2
        // Predicated region
        $region57: #{tpu_custom_call.1} parent=55 // pred_check
          %p351 = pneg %p148
        $region58: #{tpu_custom_call.1} parent=55 // pred_check_branch
          %353 = sbr.rel (%p351) target = $region60
        $region59: #{tpu_custom_call.1} parent=55 // pred_region
          %s354 = sand.u32 %s133, 1
          %s355 = scalar_lea.sflag [#allocation5], %s354
          %s356 = sand.u32 %s133, 1
          %s357 = smul.addr %s356, 16
          %s358 = scalar_lea.vmem [#allocation8], %s357
          %360 = dma.done %s355, 256
        $region60: #{tpu_custom_call.1} parent=55 // pred_fallthru
          _
      $region56: #{tpu_custom_call.1} parent=5 // pred_fallthru
        _
    $region6: #{tpu_custom_call.1} parent=1 // loop_footer
      %s20 = sadd.s32 1, %s16
    $region7: #{tpu_custom_call.1} parent=1 // loop_footer_branch
      %15 = sbr.rel target = $region3
    $region8: #{tpu_custom_call.1} parent=1 // loop_exit
      _
    %361 = vsyncpa [#allocation4], 1
    %s362 = scalar_lea.sflag [#allocation4], 1
    %363 = vsyncpa %s362, 1
    %364 = vsyncpa [#allocation7], 1
    %365 = vsyncpa [#allocation5], 1
    %s366 = scalar_lea.sflag [#allocation5], 1
    %367 = vsyncpa %s366, 1

</llo_original>
